<compile_context>
chip_gen: v5e
topology: v5e:2x2
jax: 0.10.0
libtpu: 0.0.40
codegen_flags: <defaults>
</compile_context>

<pallas_src>
import jax
import jax.numpy as jnp
from jax.experimental import pallas as pl
from jax.experimental.pallas import tpu as pltpu

# ---------------- model hyperparameters (small, consistent with the module) --
B = 2                        # batch
C, H, W = 4, 16, 16
N_INPUT = C * H * W          # 1024
N_OUTPUT = N_INPUT           # decoder emits an image-sized vector
N_LAYERS = 2                 # extra hidden layers in enc and dec
LAYER_SIZE = 32
N_Z = 2
N_LABEL = 10

# ---------------- packed f32 parameter-slab layout (LAYER_SIZE lanes wide) ---
_EW1 = 0                     # (32, 32) encoder hidden 1
_EW2 = 32                    # (32, 32) encoder hidden 2
_DW1 = 64                    # (32, 32) decoder hidden 1
_DW2 = 96                    # (32, 32) decoder hidden 2
_EW3 = 128                   # (32, 32) encoder head, only cols [:2*N_Z] used
_DWZ = 160                   # (N_Z, 32)     z-part of decoder layer 0
_DWL = 168                   # (N_LABEL, 32) lab-part of decoder layer 0
_EB0, _EB1, _EB2, _EB3 = 184, 185, 186, 187   # encoder biases (eb3 padded)
_DB0, _DB1, _DB2 = 188, 189, 190              # decoder biases (db3 separate)
SLAB_ROWS = 192


def _round_up(n, m):
    return (n + m - 1) // m * m


def cvae_kernel(x_ref, labeps_ref, ew0_ref, slab_ref, dw3_ref, db3_ref,
                out_ref):
    f32 = jnp.float32
    bf16 = jnp.bfloat16
    ls = LAYER_SIZE

    # ----- encoder: Linear -> ReLU (x3) -> Linear(2*n_z), slice mean/logsig --
    h = jnp.dot(x_ref[...], ew0_ref[...],
                preferred_element_type=f32) + slab_ref[_EB0:_EB0 + 1, :]
    h = jnp.maximum(h, 0.0)
    h = jnp.dot(h, slab_ref[_EW1:_EW1 + ls, :],
                preferred_element_type=f32) + slab_ref[_EB1:_EB1 + 1, :]
    h = jnp.maximum(h, 0.0)
    h = jnp.dot(h, slab_ref[_EW2:_EW2 + ls, :],
                preferred_element_type=f32) + slab_ref[_EB2:_EB2 + 1, :]
    h = jnp.maximum(h, 0.0)
    head = jnp.dot(h, slab_ref[_EW3:_EW3 + ls, :],
                   preferred_element_type=f32) + slab_ref[_EB3:_EB3 + 1, :]
    mean = head[:, :N_Z]
    log_sigma_sq = head[:, N_Z:2 * N_Z]

    # ----- reparameterization: z = mean + eps * sqrt(exp(log_sigma_sq)) ------
    labeps = labeps_ref[...]                         # (b_tile, N_LABEL + N_Z)
    lab = labeps[:, :N_LABEL]
    eps = labeps[:, N_LABEL:N_LABEL + N_Z]
    z = mean + eps * jnp.exp(0.5 * log_sigma_sq)

    # ----- decoder: cat([z,lab]) @ W0 == z@Wz + lab@Wl (both in-kernel) ------
    d = (jnp.dot(z, slab_ref[_DWZ:_DWZ + N_Z, :], preferred_element_type=f32)
         + jnp.dot(lab, slab_ref[_DWL:_DWL + N_LABEL, :],
                   preferred_element_type=f32)
         + slab_ref[_DB0:_DB0 + 1, :])
    d = jnp.maximum(d, 0.0)
    d = jnp.dot(d, slab_ref[_DW1:_DW1 + ls, :],
                preferred_element_type=f32) + slab_ref[_DB1:_DB1 + 1, :]
    d = jnp.maximum(d, 0.0)
    d = jnp.dot(d, slab_ref[_DW2:_DW2 + ls, :],
                preferred_element_type=f32) + slab_ref[_DB2:_DB2 + 1, :]
    d = jnp.maximum(d, 0.0)
    out = jnp.dot(d.astype(bf16), dw3_ref[...],
                  preferred_element_type=f32) + db3_ref[...]

    out_ref[...] = out.astype(out_ref.dtype)


def init_params(key):
    """Raw f32 params mimicking nn.Linear defaults: U(-1/sqrt(fan_in), +)."""
    def linear(k, fan_in, fan_out):
        kw, kb = jax.random.split(k)
        bound = 1.0 / float(fan_in) ** 0.5
        w = jax.random.uniform(kw, (fan_in, fan_out), jnp.float32, -bound, bound)
        b = jax.random.uniform(kb, (fan_out,), jnp.float32, -bound, bound)
        return w, b

    keys = jax.random.split(key, 8)
    enc = [linear(keys[0], N_INPUT, LAYER_SIZE),
           linear(keys[1], LAYER_SIZE, LAYER_SIZE),
           linear(keys[2], LAYER_SIZE, LAYER_SIZE),
           linear(keys[3], LAYER_SIZE, 2 * N_Z)]
    dec = [linear(keys[4], N_Z + N_LABEL, LAYER_SIZE),
           linear(keys[5], LAYER_SIZE, LAYER_SIZE),
           linear(keys[6], LAYER_SIZE, LAYER_SIZE),
           linear(keys[7], LAYER_SIZE, N_OUTPUT)]
    return enc, dec


def pack_params(raw):
    """Pack the small f32 params into one slab; big weights -> bf16."""
    enc, dec = raw
    (ew0, eb0), (ew1, eb1), (ew2, eb2), (ew3, eb3) = enc
    (dw0, db0), (dw1, db1), (dw2, db2), (dw3, db3) = dec

    slab = jnp.zeros((SLAB_ROWS, LAYER_SIZE), jnp.float32)
    slab = slab.at[_EW1:_EW1 + LAYER_SIZE].set(ew1)
    slab = slab.at[_EW2:_EW2 + LAYER_SIZE].set(ew2)
    slab = slab.at[_DW1:_DW1 + LAYER_SIZE].set(dw1)
    slab = slab.at[_DW2:_DW2 + LAYER_SIZE].set(dw2)
    slab = slab.at[_EW3:_EW3 + LAYER_SIZE, :2 * N_Z].set(ew3)
    slab = slab.at[_DWZ:_DWZ + N_Z].set(dw0[:N_Z])
    slab = slab.at[_DWL:_DWL + N_LABEL].set(dw0[N_Z:])
    slab = slab.at[_EB0].set(eb0)
    slab = slab.at[_EB1].set(eb1)
    slab = slab.at[_EB2].set(eb2)
    slab = slab.at[_EB3, :2 * N_Z].set(eb3)
    slab = slab.at[_DB0].set(db0)
    slab = slab.at[_DB1].set(db1)
    slab = slab.at[_DB2].set(db2)

    # the two big weights (~95% of parameter bytes) -> bf16 (MXU native)
    return (ew0.astype(jnp.bfloat16), slab, dw3.astype(jnp.bfloat16),
            db3[None, :].astype(jnp.float32))


@jax.jit
def cvae_forward(x_img, lab, eps, packed):
    ew0, slab, dw3, db3 = packed
    image_shape = x_img.shape
    bsz = image_shape[0]

    # convert_image_to_scalar; fuse bf16 cast of the dominant x stream here
    x = x_img.reshape(bsz, -1).astype(jnp.bfloat16)
    # fold the tiny eps stream into the lab per-row input (one DMA per step)
    labeps = jnp.concatenate([lab, eps], axis=-1)          # (B, N_LABEL+N_Z)

    # batch tiling: whole-array block (no padding path) at small batch;
    # 256 rows when the batch is large enough to fill the v6e/v7x MXU M dim.
    if bsz >= 256:
        b_tile = 256
    elif bsz >= 128:
        b_tile = 128
    else:
        b_tile = bsz          # block shape == full array dims -> always legal
    bsz_p = _round_up(bsz, b_tile)
    pad = bsz_p - bsz
    if pad:                   # only taken when bsz >= 128 and not a multiple
        x = jnp.pad(x, ((0, pad), (0, 0)))
        labeps = jnp.pad(labeps, ((0, pad), (0, 0)))

    grid = (bsz_p // b_tile,)

    def row_spec(n):                              # streams with the grid
        return pl.BlockSpec((b_tile, n), lambda i: (i, 0))

    def const_spec(arr):                          # VMEM-resident parameters
        return pl.BlockSpec(arr.shape, lambda i: (0, 0))

    out_flat = pl.pallas_call(
        cvae_kernel,
        out_shape=jax.ShapeDtypeStruct((bsz_p, N_OUTPUT), jnp.float32),
        grid=grid,
        in_specs=[row_spec(N_INPUT), row_spec(N_LABEL + N_Z),
                  const_spec(ew0), const_spec(slab),
                  const_spec(dw3), const_spec(db3)],
        out_specs=pl.BlockSpec((b_tile, N_OUTPUT), lambda i: (i, 0)),
        compiler_params=pltpu.CompilerParams(
            dimension_semantics=("parallel",)),   # 2-TC sharding on v7x
    )(x, labeps, ew0, slab, dw3, db3)

    if pad:
        out_flat = out_flat[:bsz]
    return out_flat.reshape(image_shape)          # convert_scalar_to_image


def cvae_forward_ref(x_img, lab, eps, raw):
    """Pure-JAX reference with identical semantics (for a sanity check)."""
    enc, dec = raw
    (ew0, eb0), (ew1, eb1), (ew2, eb2), (ew3, eb3) = enc
    (dw0, db0), (dw1, db1), (dw2, db2), (dw3, db3) = dec
    f32, bf16 = jnp.float32, jnp.bfloat16

    x = x_img.reshape(x_img.shape[0], -1)
    h = jax.nn.relu(jnp.dot(x.astype(bf16), ew0.astype(bf16),
                            preferred_element_type=f32) + eb0)
    h = jax.nn.relu(h @ ew1 + eb1)
    h = jax.nn.relu(h @ ew2 + eb2)
    head = h @ ew3 + eb3
    mean, log_sigma_sq = head[:, :N_Z], head[:, N_Z:]
    z = mean + eps * jnp.sqrt(jnp.exp(log_sigma_sq))
    zl = jnp.concatenate([z, lab], axis=-1)
    d = jax.nn.relu(zl @ dw0 + db0)
    d = jax.nn.relu(d @ dw1 + db1)
    d = jax.nn.relu(d @ dw2 + db2)
    out = jnp.dot(d.astype(bf16), dw3.astype(bf16),
                  preferred_element_type=f32) + db3
    return out.reshape(x_img.shape)


if __name__ == "__main__":
    key = jax.random.PRNGKey(0)
    k_x, k_lab, k_eps, k_params = jax.random.split(key, 4)

    x = jax.random.normal(k_x, (B, C, H, W), jnp.float32)
    lab_idx = jax.random.randint(k_lab, (B,), 0, N_LABEL)
    lab = jax.nn.one_hot(lab_idx, N_LABEL, dtype=jnp.float32)
    # torch.randn_like(mean) noise is supplied externally so the kernel is
    # deterministic; same distributional semantics as the PyTorch sample.
    eps = jax.random.normal(k_eps, (B, N_Z), jnp.float32)

    raw = init_params(k_params)
    packed = pack_params(raw)

    out = jax.block_until_ready(cvae_forward(x, lab, eps, packed))
    ref = cvae_forward_ref(x, lab, eps, raw)

    assert out.shape == x.shape
    # bf16 storage of the two big weights -> relaxed tolerance (f32 accum)
    assert jnp.allclose(out, ref, atol=1e-2, rtol=1e-2)

    print("KERNEL_OK")
</pallas_src>

<mosaic_0001>
module attributes {stable_mosaic.version = 11 : i64} {
  func.func @cvae_kernel(%arg0: i32, %arg1: memref<2x1024xbf16, #tpu.memory_space<vmem>>, %arg2: memref<2x12xf32, #tpu.memory_space<vmem>>, %arg3: memref<1024x32xbf16, #tpu.memory_space<vmem>>, %arg4: memref<192x32xf32, #tpu.memory_space<vmem>>, %arg5: memref<32x1024xbf16, #tpu.memory_space<vmem>>, %arg6: memref<1x1024xf32, #tpu.memory_space<vmem>>, %arg7: memref<2x1024xf32, #tpu.memory_space<vmem>>) attributes {dimension_semantics = [#tpu.dimension_semantics<parallel>], iteration_bounds = array<i64: 1>, scalar_prefetch = 0 : i64, scratch_operands = 0 : i64, tpu.core_type = #tpu.core_type<tc>, window_params = [{transform_indices = @transform_0, window_bounds = array<i64: 2, 1024>}, {transform_indices = @transform_1, window_bounds = array<i64: 2, 12>}, {pipeline_mode = #tpu.pipeline_mode<synchronous>, transform_indices = @transform_2, window_bounds = array<i64: 1024, 32>}, {pipeline_mode = #tpu.pipeline_mode<synchronous>, transform_indices = @transform_3, window_bounds = array<i64: 192, 32>}, {pipeline_mode = #tpu.pipeline_mode<synchronous>, transform_indices = @transform_4, window_bounds = array<i64: 32, 1024>}, {pipeline_mode = #tpu.pipeline_mode<synchronous>, transform_indices = @transform_5, window_bounds = array<i64: 1, 1024>}, {transform_indices = @transform_6, window_bounds = array<i64: 2, 1024>}]} {
    %c0 = arith.constant 0 : index
    %c0_0 = arith.constant 0 : index
    %0 = vector.load %arg1[%c0, %c0_0] : memref<2x1024xbf16, #tpu.memory_space<vmem>>, vector<2x1024xbf16>
    %c0_1 = arith.constant 0 : index
    %c0_2 = arith.constant 0 : index
    %1 = vector.load %arg3[%c0_1, %c0_2] : memref<1024x32xbf16, #tpu.memory_space<vmem>>, vector<1024x32xbf16>
    %cst = arith.constant dense<0.000000e+00> : vector<2x32xf32>
    %2 = tpu.matmul %0, %1, %cst {dimension_numbers = #tpu.dot_dimension_numbers<[1], [0], [0], [1], [0, 0, 1, 1], [], []>} : vector<2x1024xbf16>, vector<1024x32xbf16>, vector<2x32xf32> -> vector<2x32xf32>
    %c184 = arith.constant 184 : index
    %c0_3 = arith.constant 0 : index
    %3 = vector.load %arg4[%c184, %c0_3] : memref<192x32xf32, #tpu.memory_space<vmem>>, vector<1x32xf32>
    %4 = vector.broadcast %3 : vector<1x32xf32> to vector<2x32xf32>
    %5 = arith.addf %2, %4 : vector<2x32xf32>
    %cst_4 = arith.constant 0.000000e+00 : f32
    %6 = vector.broadcast %cst_4 : f32 to vector<2x32xf32>
    %7 = arith.maximumf %5, %6 : vector<2x32xf32>
    %c0_5 = arith.constant 0 : index
    %c0_6 = arith.constant 0 : index
    %8 = vector.load %arg4[%c0_5, %c0_6] : memref<192x32xf32, #tpu.memory_space<vmem>>, vector<32x32xf32>
    %cst_7 = arith.constant dense<0.000000e+00> : vector<2x32xf32>
    %9 = tpu.matmul %7, %8, %cst_7 {dimension_numbers = #tpu.dot_dimension_numbers<[1], [0], [0], [1], [0, 0, 1, 1], [], []>} : vector<2x32xf32>, vector<32x32xf32>, vector<2x32xf32> -> vector<2x32xf32>
    %c185 = arith.constant 185 : index
    %c0_8 = arith.constant 0 : index
    %10 = vector.load %arg4[%c185, %c0_8] : memref<192x32xf32, #tpu.memory_space<vmem>>, vector<1x32xf32>
    %11 = vector.broadcast %10 : vector<1x32xf32> to vector<2x32xf32>
    %12 = arith.addf %9, %11 : vector<2x32xf32>
    %cst_9 = arith.constant 0.000000e+00 : f32
    %13 = vector.broadcast %cst_9 : f32 to vector<2x32xf32>
    %14 = arith.maximumf %12, %13 : vector<2x32xf32>
    %c32 = arith.constant 32 : index
    %c0_10 = arith.constant 0 : index
    %15 = vector.load %arg4[%c32, %c0_10] : memref<192x32xf32, #tpu.memory_space<vmem>>, vector<32x32xf32>
    %cst_11 = arith.constant dense<0.000000e+00> : vector<2x32xf32>
    %16 = tpu.matmul %14, %15, %cst_11 {dimension_numbers = #tpu.dot_dimension_numbers<[1], [0], [0], [1], [0, 0, 1, 1], [], []>} : vector<2x32xf32>, vector<32x32xf32>, vector<2x32xf32> -> vector<2x32xf32>
    %c186 = arith.constant 186 : index
    %c0_12 = arith.constant 0 : index
    %17 = vector.load %arg4[%c186, %c0_12] : memref<192x32xf32, #tpu.memory_space<vmem>>, vector<1x32xf32>
    %18 = vector.broadcast %17 : vector<1x32xf32> to vector<2x32xf32>
    %19 = arith.addf %16, %18 : vector<2x32xf32>
    %cst_13 = arith.constant 0.000000e+00 : f32
    %20 = vector.broadcast %cst_13 : f32 to vector<2x32xf32>
    %21 = arith.maximumf %19, %20 : vector<2x32xf32>
    %c128 = arith.constant 128 : index
    %c0_14 = arith.constant 0 : index
    %22 = vector.load %arg4[%c128, %c0_14] : memref<192x32xf32, #tpu.memory_space<vmem>>, vector<32x32xf32>
    %cst_15 = arith.constant dense<0.000000e+00> : vector<2x32xf32>
    %23 = tpu.matmul %21, %22, %cst_15 {dimension_numbers = #tpu.dot_dimension_numbers<[1], [0], [0], [1], [0, 0, 1, 1], [], []>} : vector<2x32xf32>, vector<32x32xf32>, vector<2x32xf32> -> vector<2x32xf32>
    %c187 = arith.constant 187 : index
    %c0_16 = arith.constant 0 : index
    %24 = vector.load %arg4[%c187, %c0_16] : memref<192x32xf32, #tpu.memory_space<vmem>>, vector<1x32xf32>
    %25 = vector.broadcast %24 : vector<1x32xf32> to vector<2x32xf32>
    %26 = arith.addf %23, %25 : vector<2x32xf32>
    %27 = vector.extract_strided_slice %26 {offsets = [0, 0], sizes = [2, 2], strides = [1, 1]} : vector<2x32xf32> to vector<2x2xf32>
    %28 = vector.extract_strided_slice %26 {offsets = [0, 2], sizes = [2, 2], strides = [1, 1]} : vector<2x32xf32> to vector<2x2xf32>
    %c0_17 = arith.constant 0 : index
    %c0_18 = arith.constant 0 : index
    %29 = vector.load %arg2[%c0_17, %c0_18] : memref<2x12xf32, #tpu.memory_space<vmem>>, vector<2x12xf32>
    %30 = vector.extract_strided_slice %29 {offsets = [0, 0], sizes = [2, 10], strides = [1, 1]} : vector<2x12xf32> to vector<2x10xf32>
    %31 = vector.extract_strided_slice %29 {offsets = [0, 10], sizes = [2, 2], strides = [1, 1]} : vector<2x12xf32> to vector<2x2xf32>
    %cst_19 = arith.constant 5.000000e-01 : f32
    %32 = vector.broadcast %cst_19 : f32 to vector<2x2xf32>
    %33 = arith.mulf %32, %28 : vector<2x2xf32>
    %34 = math.exp %33 : vector<2x2xf32>
    %35 = arith.mulf %31, %34 : vector<2x2xf32>
    %36 = arith.addf %27, %35 : vector<2x2xf32>
    %c160 = arith.constant 160 : index
    %c0_20 = arith.constant 0 : index
    %37 = vector.load %arg4[%c160, %c0_20] : memref<192x32xf32, #tpu.memory_space<vmem>>, vector<2x32xf32>
    %cst_21 = arith.constant dense<0.000000e+00> : vector<2x32xf32>
    %38 = tpu.matmul %36, %37, %cst_21 {dimension_numbers = #tpu.dot_dimension_numbers<[1], [0], [0], [1], [0, 0, 1, 1], [], []>} : vector<2x2xf32>, vector<2x32xf32>, vector<2x32xf32> -> vector<2x32xf32>
    %c168 = arith.constant 168 : index
    %c0_22 = arith.constant 0 : index
    %39 = vector.load %arg4[%c168, %c0_22] : memref<192x32xf32, #tpu.memory_space<vmem>>, vector<10x32xf32>
    %cst_23 = arith.constant dense<0.000000e+00> : vector<2x32xf32>
    %40 = tpu.matmul %30, %39, %cst_23 {dimension_numbers = #tpu.dot_dimension_numbers<[1], [0], [0], [1], [0, 0, 1, 1], [], []>} : vector<2x10xf32>, vector<10x32xf32>, vector<2x32xf32> -> vector<2x32xf32>
    %41 = arith.addf %38, %40 : vector<2x32xf32>
    %c188 = arith.constant 188 : index
    %c0_24 = arith.constant 0 : index
    %42 = vector.load %arg4[%c188, %c0_24] : memref<192x32xf32, #tpu.memory_space<vmem>>, vector<1x32xf32>
    %43 = vector.broadcast %42 : vector<1x32xf32> to vector<2x32xf32>
    %44 = arith.addf %41, %43 : vector<2x32xf32>
    %cst_25 = arith.constant 0.000000e+00 : f32
    %45 = vector.broadcast %cst_25 : f32 to vector<2x32xf32>
    %46 = arith.maximumf %44, %45 : vector<2x32xf32>
    %c64 = arith.constant 64 : index
    %c0_26 = arith.constant 0 : index
    %47 = vector.load %arg4[%c64, %c0_26] : memref<192x32xf32, #tpu.memory_space<vmem>>, vector<32x32xf32>
    %cst_27 = arith.constant dense<0.000000e+00> : vector<2x32xf32>
    %48 = tpu.matmul %46, %47, %cst_27 {dimension_numbers = #tpu.dot_dimension_numbers<[1], [0], [0], [1], [0, 0, 1, 1], [], []>} : vector<2x32xf32>, vector<32x32xf32>, vector<2x32xf32> -> vector<2x32xf32>
    %c189 = arith.constant 189 : index
    %c0_28 = arith.constant 0 : index
    %49 = vector.load %arg4[%c189, %c0_28] : memref<192x32xf32, #tpu.memory_space<vmem>>, vector<1x32xf32>
    %50 = vector.broadcast %49 : vector<1x32xf32> to vector<2x32xf32>
    %51 = arith.addf %48, %50 : vector<2x32xf32>
    %cst_29 = arith.constant 0.000000e+00 : f32
    %52 = vector.broadcast %cst_29 : f32 to vector<2x32xf32>
    %53 = arith.maximumf %51, %52 : vector<2x32xf32>
    %c96 = arith.constant 96 : index
    %c0_30 = arith.constant 0 : index
    %54 = vector.load %arg4[%c96, %c0_30] : memref<192x32xf32, #tpu.memory_space<vmem>>, vector<32x32xf32>
    %cst_31 = arith.constant dense<0.000000e+00> : vector<2x32xf32>
    %55 = tpu.matmul %53, %54, %cst_31 {dimension_numbers = #tpu.dot_dimension_numbers<[1], [0], [0], [1], [0, 0, 1, 1], [], []>} : vector<2x32xf32>, vector<32x32xf32>, vector<2x32xf32> -> vector<2x32xf32>
    %c190 = arith.constant 190 : index
    %c0_32 = arith.constant 0 : index
    %56 = vector.load %arg4[%c190, %c0_32] : memref<192x32xf32, #tpu.memory_space<vmem>>, vector<1x32xf32>
    %57 = vector.broadcast %56 : vector<1x32xf32> to vector<2x32xf32>
    %58 = arith.addf %55, %57 : vector<2x32xf32>
    %cst_33 = arith.constant 0.000000e+00 : f32
    %59 = vector.broadcast %cst_33 : f32 to vector<2x32xf32>
    %60 = arith.maximumf %58, %59 : vector<2x32xf32>
    %61 = arith.truncf %60 : vector<2x32xf32> to vector<2x32xbf16>
    %c0_34 = arith.constant 0 : index
    %c0_35 = arith.constant 0 : index
    %62 = vector.load %arg5[%c0_34, %c0_35] : memref<32x1024xbf16, #tpu.memory_space<vmem>>, vector<32x1024xbf16>
    %cst_36 = arith.constant dense<0.000000e+00> : vector<2x1024xf32>
    %63 = tpu.matmul %61, %62, %cst_36 {dimension_numbers = #tpu.dot_dimension_numbers<[1], [0], [0], [1], [0, 0, 1, 1], [], []>} : vector<2x32xbf16>, vector<32x1024xbf16>, vector<2x1024xf32> -> vector<2x1024xf32>
    %c0_37 = arith.constant 0 : index
    %c0_38 = arith.constant 0 : index
    %64 = vector.load %arg6[%c0_37, %c0_38] : memref<1x1024xf32, #tpu.memory_space<vmem>>, vector<1x1024xf32>
    %65 = vector.broadcast %64 : vector<1x1024xf32> to vector<2x1024xf32>
    %66 = arith.addf %63, %65 : vector<2x1024xf32>
    %c0_39 = arith.constant 0 : index
    %c0_40 = arith.constant 0 : index
    %67 = vector.load %arg7[%c0_39, %c0_40] : memref<2x1024xf32, #tpu.memory_space<vmem>>, vector<2x1024xf32>
    tpu.vector_store %arg7[%c0_39, %c0_40], %66 {strides = array<i32>} : memref<2x1024xf32, #tpu.memory_space<vmem>>, vector<2x1024xf32>,
    return
  }
  func.func @transform_0(%arg0: i32) -> (i32, i32) {
    %c0_i32 = arith.constant 0 : i32
    %c0_i32_0 = arith.constant 0 : i32
    return %arg0, %c0_i32 : i32, i32
  }
  func.func @transform_1(%arg0: i32) -> (i32, i32) {
    %c0_i32 = arith.constant 0 : i32
    %c0_i32_0 = arith.constant 0 : i32
    return %arg0, %c0_i32 : i32, i32
  }
  func.func @transform_2(%arg0: i32) -> (i32, i32) {
    %c0_i32 = arith.constant 0 : i32
    %c0_i32_0 = arith.constant 0 : i32
    %c0_i32_1 = arith.constant 0 : i32
    return %c0_i32, %c0_i32_0 : i32, i32
  }
  func.func @transform_3(%arg0: i32) -> (i32, i32) {
    %c0_i32 = arith.constant 0 : i32
    %c0_i32_0 = arith.constant 0 : i32
    %c0_i32_1 = arith.constant 0 : i32
    return %c0_i32, %c0_i32_0 : i32, i32
  }
  func.func @transform_4(%arg0: i32) -> (i32, i32) {
    %c0_i32 = arith.constant 0 : i32
    %c0_i32_0 = arith.constant 0 : i32
    %c0_i32_1 = arith.constant 0 : i32
    return %c0_i32, %c0_i32_0 : i32, i32
  }
  func.func @transform_5(%arg0: i32) -> (i32, i32) {
    %c0_i32 = arith.constant 0 : i32
    %c0_i32_0 = arith.constant 0 : i32
    %c0_i32_1 = arith.constant 0 : i32
    return %c0_i32, %c0_i32_0 : i32, i32
  }
  func.func @transform_6(%arg0: i32) -> (i32, i32) {
    %c0_i32 = arith.constant 0 : i32
    %c0_i32_0 = arith.constant 0 : i32
    return %arg0, %c0_i32 : i32, i32
  }
}

</mosaic_0001>

<llo_original>
// kernel: cvae_forward.1
$region0: #{cvae_forward.1}
  #allocation0 [shape = 'u32[]', space=smem, size = 0x4, offset = 0x4, fixed_abs, tag = 'smem constant byte address 0x4 - core index']
  #allocation1 [shape = 'u32[72,128]{1,0:T(1,128)}', space=vmem, size = 0x9000, scoped, tag = 'internal scratch']
  %s0 = inlined_call_operand.vmem [shape: bf16[2,1024], index: 0, kind: input, shape index: {}]
  %s1 = inlined_call_operand.vmem [shape: f32[2,12], index: 1, kind: input, shape index: {}]
  %s2 = inlined_call_operand.vmem [shape: bf16[1024,32], index: 2, kind: input, shape index: {}]
  %s3 = inlined_call_operand.vmem [shape: f32[192,32], index: 3, kind: input, shape index: {}]
  %s4 = inlined_call_operand.vmem [shape: bf16[32,1024], index: 4, kind: input, shape index: {}]
  %s5 = inlined_call_operand.vmem [shape: f32[1,1024], index: 5, kind: input, shape index: {}]
  %s6 = inlined_call_operand.vmem [shape: f32[2,1024], index: 6, kind: output, shape index: {}]
  %s7 = sld [smem:[#allocation0]]
  $region34: #{cvae_forward.1} parent=0
    _
  %s9 = ssub.s32 1, %s7
  %s10 = scalar_select 0, %s9, %s7
  // Predicated region
  $region2: #{cvae_forward.1} parent=0 // pred_check
    _
  $region3: #{cvae_forward.1} parent=0 // pred_check_branch
    %12 = sbr.rel (0) target = $region5
  $region4: #{cvae_forward.1} parent=0 // pred_region
    _
  $region5: #{cvae_forward.1} parent=0 // pred_fallthru
    _
  // Predicated region
  $region6: #{cvae_forward.1} parent=0 // pred_check
    _
  $region7: #{cvae_forward.1} parent=0 // pred_check_branch
    %14 = sbr.rel (0) target = $region9
  $region8: #{cvae_forward.1} parent=0 // pred_region
    _
  $region9: #{cvae_forward.1} parent=0 // pred_fallthru
    _
  // Predicated region
  $region10: #{cvae_forward.1} parent=0 // pred_check
    _
  $region11: #{cvae_forward.1} parent=0 // pred_check_branch
    %16 = sbr.rel (0) target = $region13
  $region12: #{cvae_forward.1} parent=0 // pred_region
    _
  $region13: #{cvae_forward.1} parent=0 // pred_fallthru
    _
  // Predicated region
  $region14: #{cvae_forward.1} parent=0 // pred_check
    _
  $region15: #{cvae_forward.1} parent=0 // pred_check_branch
    %18 = sbr.rel (0) target = $region17
  $region16: #{cvae_forward.1} parent=0 // pred_region
    _
  $region17: #{cvae_forward.1} parent=0 // pred_fallthru
    _
  // Predicated region
  $region18: #{cvae_forward.1} parent=0 // pred_check
    _
  $region19: #{cvae_forward.1} parent=0 // pred_check_branch
    %20 = sbr.rel (0) target = $region21
  $region20: #{cvae_forward.1} parent=0 // pred_region
    _
  $region21: #{cvae_forward.1} parent=0 // pred_fallthru
    _
  // Predicated region
  $region22: #{cvae_forward.1} parent=0 // pred_check
    _
  $region23: #{cvae_forward.1} parent=0 // pred_check_branch
    %22 = sbr.rel (0) target = $region25
  $region24: #{cvae_forward.1} parent=0 // pred_region
    _
  $region25: #{cvae_forward.1} parent=0 // pred_fallthru
    _
  %v24 = vld [vmem:[%s0] sm:$0xff]
  %v25 = vld [vmem:[%s2] sm:$0xf]
  %v26 = vld [vmem:[%s2 + $0x4] sm:$0xf]
  %v27 = vld [vmem:[%s2 + $0x8] sm:$0xf]
  %v28 = vld [vmem:[%s2 + $0xc] sm:$0xf]
  %v29 = vld [vmem:[%s2 + $0x10] sm:$0xf]
  %v30 = vld [vmem:[%s2 + $0x14] sm:$0xf]
  %v31 = vld [vmem:[%s2 + $0x18] sm:$0xf]
  %v32 = vld [vmem:[%s2 + $0x1c] sm:$0xf]
  %v33 = vld [vmem:[%s2 + $0x20] sm:$0xf]
  %v34 = vld [vmem:[%s2 + $0x24] sm:$0xf]
  %v35 = vld [vmem:[%s2 + $0x28] sm:$0xf]
  %v36 = vld [vmem:[%s2 + $0x2c] sm:$0xf]
  %v37 = vld [vmem:[%s2 + $0x30] sm:$0xf]
  %v38 = vld [vmem:[%s2 + $0x34] sm:$0xf]
  %v39 = vld [vmem:[%s2 + $0x38] sm:$0xf]
  %v40 = vld [vmem:[%s2 + $0x3c] sm:$0xf]
  %v41 = vld [vmem:[%s2 + $0x40] sm:$0xf]
  %v42 = vld [vmem:[%s2 + $0x44] sm:$0xf]
  %v43 = vld [vmem:[%s2 + $0x48] sm:$0xf]
  %v44 = vld [vmem:[%s2 + $0x4c] sm:$0xf]
  %v45 = vld [vmem:[%s2 + $0x50] sm:$0xf]
  %v46 = vld [vmem:[%s2 + $0x54] sm:$0xf]
  %v47 = vld [vmem:[%s2 + $0x58] sm:$0xf]
  %v48 = vld [vmem:[%s2 + $0x5c] sm:$0xf]
  %v49 = vld [vmem:[%s2 + $0x60] sm:$0xf]
  %v50 = vld [vmem:[%s2 + $0x64] sm:$0xf]
  %v51 = vld [vmem:[%s2 + $0x68] sm:$0xf]
  %v52 = vld [vmem:[%s2 + $0x6c] sm:$0xf]
  %v53 = vld [vmem:[%s2 + $0x70] sm:$0xf]
  %v54 = vld [vmem:[%s2 + $0x74] sm:$0xf]
  %v55 = vld [vmem:[%s2 + $0x78] sm:$0xf]
  %v56 = vld [vmem:[%s2 + $0x7c] sm:$0xf]
  %v57 = vld [vmem:[%s2 + $0x80] sm:$0xf]
  %v58 = vld [vmem:[%s2 + $0x84] sm:$0xf]
  %v59 = vld [vmem:[%s2 + $0x88] sm:$0xf]
  %v60 = vld [vmem:[%s2 + $0x8c] sm:$0xf]
  %v61 = vld [vmem:[%s2 + $0x90] sm:$0xf]
  %v62 = vld [vmem:[%s2 + $0x94] sm:$0xf]
  %v63 = vld [vmem:[%s2 + $0x98] sm:$0xf]
  %v64 = vld [vmem:[%s2 + $0x9c] sm:$0xf]
  %v65 = vld [vmem:[%s2 + $0xa0] sm:$0xf]
  %v66 = vld [vmem:[%s2 + $0xa4] sm:$0xf]
  %v67 = vld [vmem:[%s2 + $0xa8] sm:$0xf]
  %v68 = vld [vmem:[%s2 + $0xac] sm:$0xf]
  %v69 = vld [vmem:[%s2 + $0xb0] sm:$0xf]
  %v70 = vld [vmem:[%s2 + $0xb4] sm:$0xf]
  %v71 = vld [vmem:[%s2 + $0xb8] sm:$0xf]
  %v72 = vld [vmem:[%s2 + $0xbc] sm:$0xf]
  %v73 = vld [vmem:[%s2 + $0xc0] sm:$0xf]
  %v74 = vld [vmem:[%s2 + $0xc4] sm:$0xf]
  %v75 = vld [vmem:[%s2 + $0xc8] sm:$0xf]
  %v76 = vld [vmem:[%s2 + $0xcc] sm:$0xf]
  %v77 = vld [vmem:[%s2 + $0xd0] sm:$0xf]
  %v78 = vld [vmem:[%s2 + $0xd4] sm:$0xf]
  %v79 = vld [vmem:[%s2 + $0xd8] sm:$0xf]
  %v80 = vld [vmem:[%s2 + $0xdc] sm:$0xf]
  %v81 = vld [vmem:[%s2 + $0xe0] sm:$0xf]
  %v82 = vld [vmem:[%s2 + $0xe4] sm:$0xf]
  %v83 = vld [vmem:[%s2 + $0xe8] sm:$0xf]
  %v84 = vld [vmem:[%s2 + $0xec] sm:$0xf]
  %v85 = vld [vmem:[%s2 + $0xf0] sm:$0xf]
  %v86 = vld [vmem:[%s2 + $0xf4] sm:$0xf]
  %v87 = vld [vmem:[%s2 + $0xf8] sm:$0xf]
  %v88 = vld [vmem:[%s2 + $0xfc] sm:$0xf]
  %v89 = vld [vmem:[%s2 + $0x100] sm:$0xf]
  %v90 = vld [vmem:[%s2 + $0x104] sm:$0xf]
  %v91 = vld [vmem:[%s2 + $0x108] sm:$0xf]
  %v92 = vld [vmem:[%s2 + $0x10c] sm:$0xf]
  %v93 = vld [vmem:[%s2 + $0x110] sm:$0xf]
  %v94 = vld [vmem:[%s2 + $0x114] sm:$0xf]
  %v95 = vld [vmem:[%s2 + $0x118] sm:$0xf]
  %v96 = vld [vmem:[%s2 + $0x11c] sm:$0xf]
  %v97 = vld [vmem:[%s2 + $0x120] sm:$0xf]
  %v98 = vld [vmem:[%s2 + $0x124] sm:$0xf]
  %v99 = vld [vmem:[%s2 + $0x128] sm:$0xf]
  %v100 = vld [vmem:[%s2 + $0x12c] sm:$0xf]
  %v101 = vld [vmem:[%s2 + $0x130] sm:$0xf]
  %v102 = vld [vmem:[%s2 + $0x134] sm:$0xf]
  %v103 = vld [vmem:[%s2 + $0x138] sm:$0xf]
  %v104 = vld [vmem:[%s2 + $0x13c] sm:$0xf]
  %v105 = vld [vmem:[%s2 + $0x140] sm:$0xf]
  %v106 = vld [vmem:[%s2 + $0x144] sm:$0xf]
  %v107 = vld [vmem:[%s2 + $0x148] sm:$0xf]
  %v108 = vld [vmem:[%s2 + $0x14c] sm:$0xf]
  %v109 = vld [vmem:[%s2 + $0x150] sm:$0xf]
  %v110 = vld [vmem:[%s2 + $0x154] sm:$0xf]
  %v111 = vld [vmem:[%s2 + $0x158] sm:$0xf]
  %v112 = vld [vmem:[%s2 + $0x15c] sm:$0xf]
  %v113 = vld [vmem:[%s2 + $0x160] sm:$0xf]
  %v114 = vld [vmem:[%s2 + $0x164] sm:$0xf]
  %v115 = vld [vmem:[%s2 + $0x168] sm:$0xf]
  %v116 = vld [vmem:[%s2 + $0x16c] sm:$0xf]
  %v117 = vld [vmem:[%s2 + $0x170] sm:$0xf]
  %v118 = vld [vmem:[%s2 + $0x174] sm:$0xf]
  %v119 = vld [vmem:[%s2 + $0x178] sm:$0xf]
  %v120 = vld [vmem:[%s2 + $0x17c] sm:$0xf]
  %v121 = vld [vmem:[%s2 + $0x180] sm:$0xf]
  %v122 = vld [vmem:[%s2 + $0x184] sm:$0xf]
  %v123 = vld [vmem:[%s2 + $0x188] sm:$0xf]
  %v124 = vld [vmem:[%s2 + $0x18c] sm:$0xf]
  %v125 = vld [vmem:[%s2 + $0x190] sm:$0xf]
  %v126 = vld [vmem:[%s2 + $0x194] sm:$0xf]
  %v127 = vld [vmem:[%s2 + $0x198] sm:$0xf]
  %v128 = vld [vmem:[%s2 + $0x19c] sm:$0xf]
  %v129 = vld [vmem:[%s2 + $0x1a0] sm:$0xf]
  %v130 = vld [vmem:[%s2 + $0x1a4] sm:$0xf]
  %v131 = vld [vmem:[%s2 + $0x1a8] sm:$0xf]
  %v132 = vld [vmem:[%s2 + $0x1ac] sm:$0xf]
  %v133 = vld [vmem:[%s2 + $0x1b0] sm:$0xf]
  %v134 = vld [vmem:[%s2 + $0x1b4] sm:$0xf]
  %v135 = vld [vmem:[%s2 + $0x1b8] sm:$0xf]
  %v136 = vld [vmem:[%s2 + $0x1bc] sm:$0xf]
  %v137 = vld [vmem:[%s2 + $0x1c0] sm:$0xf]
  %v138 = vld [vmem:[%s2 + $0x1c4] sm:$0xf]
  %v139 = vld [vmem:[%s2 + $0x1c8] sm:$0xf]
  %v140 = vld [vmem:[%s2 + $0x1cc] sm:$0xf]
  %v141 = vld [vmem:[%s2 + $0x1d0] sm:$0xf]
  %v142 = vld [vmem:[%s2 + $0x1d4] sm:$0xf]
  %v143 = vld [vmem:[%s2 + $0x1d8] sm:$0xf]
  %v144 = vld [vmem:[%s2 + $0x1dc] sm:$0xf]
  %v145 = vld [vmem:[%s2 + $0x1e0] sm:$0xf]
  %v146 = vld [vmem:[%s2 + $0x1e4] sm:$0xf]
  %v147 = vld [vmem:[%s2 + $0x1e8] sm:$0xf]
  %v148 = vld [vmem:[%s2 + $0x1ec] sm:$0xf]
  %v149 = vld [vmem:[%s2 + $0x1f0] sm:$0xf]
  %v150 = vld [vmem:[%s2 + $0x1f4] sm:$0xf]
  %v151 = vld [vmem:[%s2 + $0x1f8] sm:$0xf]
  %v152 = vld [vmem:[%s2 + $0x1fc] sm:$0xf]
  %v153 = vld [vmem:[%s3 + $0xb8] sm:$0x1]
  %v154 = vperm.slane %v153, 0
  %156 = vst [vmem:[#allocation1] ss:$9 sm:$0xff] %v24
  %v157 = vld [vmem:[#allocation1] sm:$0xff]
  %v158 = vld [vmem:[#allocation1 + $0x9] sm:$0xff]
  %v159 = vld [vmem:[#allocation1 + $0x12] sm:$0xff]
  %v160 = vld [vmem:[#allocation1 + $0x1b] sm:$0xff]
  %v161 = vld [vmem:[#allocation1 + $0x24] sm:$0xff]
  %v162 = vld [vmem:[#allocation1 + $0x2d] sm:$0xff]
  %v163 = vld [vmem:[#allocation1 + $0x36] sm:$0xff]
  %v164 = vld [vmem:[#allocation1 + $0x3f] sm:$0xff]
  %v301 = vunpack.c.l.b16 %v25
  %v302 = vunpack.c.l.b16 %v26
  %v303 = vunpack.c.l.b16 %v27
  %v304 = vunpack.c.l.b16 %v28
  %v305 = vunpack.c.l.b16 %v29
  %v306 = vunpack.c.l.b16 %v30
  %v307 = vunpack.c.l.b16 %v31
  %v308 = vunpack.c.l.b16 %v32
  %v309 = vunpack.c.l.b16 %v33
  %v310 = vunpack.c.l.b16 %v34
  %v311 = vunpack.c.l.b16 %v35
  %v312 = vunpack.c.l.b16 %v36
  %v313 = vunpack.c.l.b16 %v37
  %v314 = vunpack.c.l.b16 %v38
  %v315 = vunpack.c.l.b16 %v39
  %v316 = vunpack.c.l.b16 %v40
  %v317 = vunpack.c.l.b16 %v41
  %v318 = vunpack.c.l.b16 %v42
  %v319 = vunpack.c.l.b16 %v43
  %v320 = vunpack.c.l.b16 %v44
  %v321 = vunpack.c.l.b16 %v45
  %v322 = vunpack.c.l.b16 %v46
  %v323 = vunpack.c.l.b16 %v47
  %v324 = vunpack.c.l.b16 %v48
  %v325 = vunpack.c.l.b16 %v49
  %v326 = vunpack.c.l.b16 %v50
  %v327 = vunpack.c.l.b16 %v51
  %v328 = vunpack.c.l.b16 %v52
  %v329 = vunpack.c.l.b16 %v53
  %v330 = vunpack.c.l.b16 %v54
  %v331 = vunpack.c.l.b16 %v55
  %v332 = vunpack.c.l.b16 %v56
  %v333 = vunpack.c.l.b16 %v57
  %v334 = vunpack.c.l.b16 %v58
  %v335 = vunpack.c.l.b16 %v59
  %v336 = vunpack.c.l.b16 %v60
  %v337 = vunpack.c.l.b16 %v61
  %v338 = vunpack.c.l.b16 %v62
  %v339 = vunpack.c.l.b16 %v63
  %v340 = vunpack.c.l.b16 %v64
  %v341 = vunpack.c.l.b16 %v65
  %v342 = vunpack.c.l.b16 %v66
  %v343 = vunpack.c.l.b16 %v67
  %v344 = vunpack.c.l.b16 %v68
  %v345 = vunpack.c.l.b16 %v69
  %v346 = vunpack.c.l.b16 %v70
  %v347 = vunpack.c.l.b16 %v71
  %v348 = vunpack.c.l.b16 %v72
  %v349 = vunpack.c.l.b16 %v73
  %v350 = vunpack.c.l.b16 %v74
  %v351 = vunpack.c.l.b16 %v75
  %v352 = vunpack.c.l.b16 %v76
  %v353 = vunpack.c.l.b16 %v77
  %v354 = vunpack.c.l.b16 %v78
  %v355 = vunpack.c.l.b16 %v79
  %v356 = vunpack.c.l.b16 %v80
  %v357 = vunpack.c.l.b16 %v81
  %v358 = vunpack.c.l.b16 %v82
  %v359 = vunpack.c.l.b16 %v83
  %v360 = vunpack.c.l.b16 %v84
  %v361 = vunpack.c.l.b16 %v85
  %v362 = vunpack.c.l.b16 %v86
  %v363 = vunpack.c.l.b16 %v87
  %v364 = vunpack.c.l.b16 %v88
  %v365 = vunpack.c.l.b16 %v89
  %v366 = vunpack.c.l.b16 %v90
  %v367 = vunpack.c.l.b16 %v91
  %v368 = vunpack.c.l.b16 %v92
  %v369 = vunpack.c.l.b16 %v93
  %v370 = vunpack.c.l.b16 %v94
  %v371 = vunpack.c.l.b16 %v95
  %v372 = vunpack.c.l.b16 %v96
  %v373 = vunpack.c.l.b16 %v97
  %v374 = vunpack.c.l.b16 %v98
  %v375 = vunpack.c.l.b16 %v99
  %v376 = vunpack.c.l.b16 %v100
  %v377 = vunpack.c.l.b16 %v101
  %v378 = vunpack.c.l.b16 %v102
  %v379 = vunpack.c.l.b16 %v103
  %v380 = vunpack.c.l.b16 %v104
  %v381 = vunpack.c.l.b16 %v105
  %v382 = vunpack.c.l.b16 %v106
  %v383 = vunpack.c.l.b16 %v107
  %v384 = vunpack.c.l.b16 %v108
  %v385 = vunpack.c.l.b16 %v109
  %v386 = vunpack.c.l.b16 %v110
  %v387 = vunpack.c.l.b16 %v111
  %v388 = vunpack.c.l.b16 %v112
  %v389 = vunpack.c.l.b16 %v113
  %v390 = vunpack.c.l.b16 %v114
  %v391 = vunpack.c.l.b16 %v115
  %v392 = vunpack.c.l.b16 %v116
  %v393 = vunpack.c.l.b16 %v117
  %v394 = vunpack.c.l.b16 %v118
  %v395 = vunpack.c.l.b16 %v119
  %v396 = vunpack.c.l.b16 %v120
  %v397 = vunpack.c.l.b16 %v121
  %v398 = vunpack.c.l.b16 %v122
  %v399 = vunpack.c.l.b16 %v123
  %v400 = vunpack.c.l.b16 %v124
  %v401 = vunpack.c.l.b16 %v125
  %v402 = vunpack.c.l.b16 %v126
  %v403 = vunpack.c.l.b16 %v127
  %v404 = vunpack.c.l.b16 %v128
  %v405 = vunpack.c.l.b16 %v129
  %v406 = vunpack.c.l.b16 %v130
  %v407 = vunpack.c.l.b16 %v131
  %v408 = vunpack.c.l.b16 %v132
  %v409 = vunpack.c.l.b16 %v133
  %v410 = vunpack.c.l.b16 %v134
  %v411 = vunpack.c.l.b16 %v135
  %v412 = vunpack.c.l.b16 %v136
  %v413 = vunpack.c.l.b16 %v137
  %v414 = vunpack.c.l.b16 %v138
  %v415 = vunpack.c.l.b16 %v139
  %v416 = vunpack.c.l.b16 %v140
  %v417 = vunpack.c.l.b16 %v141
  %v418 = vunpack.c.l.b16 %v142
  %v419 = vunpack.c.l.b16 %v143
  %v420 = vunpack.c.l.b16 %v144
  %v421 = vunpack.c.l.b16 %v145
  %v422 = vunpack.c.l.b16 %v146
  %v423 = vunpack.c.l.b16 %v147
  %v424 = vunpack.c.l.b16 %v148
  %v425 = vunpack.c.l.b16 %v149
  %v426 = vunpack.c.l.b16 %v150
  %v427 = vunpack.c.l.b16 %v151
  %v428 = vunpack.c.l.b16 %v152
  %v429 = vpack.c.b16 %v302, %v301
  %v430 = vpack.c.b16 %v304, %v303
  %v431 = vpack.c.b16 %v306, %v305
  %v432 = vpack.c.b16 %v308, %v307
  %v433 = vpack.c.b16 %v310, %v309
  %v434 = vpack.c.b16 %v312, %v311
  %v435 = vpack.c.b16 %v314, %v313
  %v436 = vpack.c.b16 %v316, %v315
  %v437 = vpack.c.b16 %v318, %v317
  %v438 = vpack.c.b16 %v320, %v319
  %v439 = vpack.c.b16 %v322, %v321
  %v440 = vpack.c.b16 %v324, %v323
  %v441 = vpack.c.b16 %v326, %v325
  %v442 = vpack.c.b16 %v328, %v327
  %v443 = vpack.c.b16 %v330, %v329
  %v444 = vpack.c.b16 %v332, %v331
  %v445 = vpack.c.b16 %v334, %v333
  %v446 = vpack.c.b16 %v336, %v335
  %v447 = vpack.c.b16 %v338, %v337
  %v448 = vpack.c.b16 %v340, %v339
  %v449 = vpack.c.b16 %v342, %v341
  %v450 = vpack.c.b16 %v344, %v343
  %v451 = vpack.c.b16 %v346, %v345
  %v452 = vpack.c.b16 %v348, %v347
  %v453 = vpack.c.b16 %v350, %v349
  %v454 = vpack.c.b16 %v352, %v351
  %v455 = vpack.c.b16 %v354, %v353
  %v456 = vpack.c.b16 %v356, %v355
  %v457 = vpack.c.b16 %v358, %v357
  %v458 = vpack.c.b16 %v360, %v359
  %v459 = vpack.c.b16 %v362, %v361
  %v460 = vpack.c.b16 %v364, %v363
  %v461 = vpack.c.b16 %v366, %v365
  %v462 = vpack.c.b16 %v368, %v367
  %v463 = vpack.c.b16 %v370, %v369
  %v464 = vpack.c.b16 %v372, %v371
  %v465 = vpack.c.b16 %v374, %v373
  %v466 = vpack.c.b16 %v376, %v375
  %v467 = vpack.c.b16 %v378, %v377
  %v468 = vpack.c.b16 %v380, %v379
  %v469 = vpack.c.b16 %v382, %v381
  %v470 = vpack.c.b16 %v384, %v383
  %v471 = vpack.c.b16 %v386, %v385
  %v472 = vpack.c.b16 %v388, %v387
  %v473 = vpack.c.b16 %v390, %v389
  %v474 = vpack.c.b16 %v392, %v391
  %v475 = vpack.c.b16 %v394, %v393
  %v476 = vpack.c.b16 %v396, %v395
  %v477 = vpack.c.b16 %v398, %v397
  %v478 = vpack.c.b16 %v400, %v399
  %v479 = vpack.c.b16 %v402, %v401
  %v480 = vpack.c.b16 %v404, %v403
  %v481 = vpack.c.b16 %v406, %v405
  %v482 = vpack.c.b16 %v408, %v407
  %v483 = vpack.c.b16 %v410, %v409
  %v484 = vpack.c.b16 %v412, %v411
  %v485 = vpack.c.b16 %v414, %v413
  %v486 = vpack.c.b16 %v416, %v415
  %v487 = vpack.c.b16 %v418, %v417
  %v488 = vpack.c.b16 %v420, %v419
  %v489 = vpack.c.b16 %v422, %v421
  %v490 = vpack.c.b16 %v424, %v423
  %v491 = vpack.c.b16 %v426, %v425
  %v492 = vpack.c.b16 %v428, %v427
  %557 = vmatpush.bf16.msra.mxu0 %v436
  %558 = vmatpush.bf16.msra.mxu0 %v435
  %559 = vmatpush.bf16.msra.mxu0 %v434
  %560 = vmatpush.bf16.msra.mxu0 %v433
  %561 = vmatpush.bf16.msra.mxu0 %v432
  %562 = vmatpush.bf16.msra.mxu0 %v431
  %563 = vmatpush.bf16.msra.mxu0 %v430
  %564 = vmatpush.bf16.msra.mxu0 %v429
  %565 = vmatmul.bf16.gmra.mxu0 %v157
  %v566 = vpop.f32.mrf.mxu0
  %v567 = vadd.f32 %v154, %v566
  %v568 = vpop.f32.mrf.mxu0
  %569 = vdwg.mxu0
  %570 = vmatpush.bf16.msra.mxu0 %v444
  %571 = vmatpush.bf16.msra.mxu0 %v443
  %572 = vmatpush.bf16.msra.mxu0 %v442
  %573 = vmatpush.bf16.msra.mxu0 %v441
  %574 = vmatpush.bf16.msra.mxu0 %v440
  %575 = vmatpush.bf16.msra.mxu0 %v439
  %576 = vmatpush.bf16.msra.mxu0 %v438
  %577 = vmatpush.bf16.msra.mxu0 %v437
  %578 = vmatmul.bf16.gmra.mxu0 %v158
  %v579 = vpop.f32.mrf.mxu0
  %v580 = vadd.f32 %v567, %v579
  %v581 = vpop.f32.mrf.mxu0
  %582 = vdwg.mxu0
  %583 = vmatpush.bf16.msra.mxu0 %v452
  %584 = vmatpush.bf16.msra.mxu0 %v451
  %585 = vmatpush.bf16.msra.mxu0 %v450
  %586 = vmatpush.bf16.msra.mxu0 %v449
  %587 = vmatpush.bf16.msra.mxu0 %v448
  %588 = vmatpush.bf16.msra.mxu0 %v447
  %589 = vmatpush.bf16.msra.mxu0 %v446
  %590 = vmatpush.bf16.msra.mxu0 %v445
  %591 = vmatmul.bf16.gmra.mxu0 %v159
  %v592 = vpop.f32.mrf.mxu0
  %v593 = vadd.f32 %v580, %v592
  %v594 = vpop.f32.mrf.mxu0
  %595 = vdwg.mxu0
  %596 = vmatpush.bf16.msra.mxu0 %v460
  %597 = vmatpush.bf16.msra.mxu0 %v459
  %598 = vmatpush.bf16.msra.mxu0 %v458
  %599 = vmatpush.bf16.msra.mxu0 %v457
  %600 = vmatpush.bf16.msra.mxu0 %v456
  %601 = vmatpush.bf16.msra.mxu0 %v455
  %602 = vmatpush.bf16.msra.mxu0 %v454
  %603 = vmatpush.bf16.msra.mxu0 %v453
  %604 = vmatmul.bf16.gmra.mxu0 %v160
  %v605 = vpop.f32.mrf.mxu0
  %v606 = vadd.f32 %v593, %v605
  %v607 = vpop.f32.mrf.mxu0
  %608 = vdwg.mxu0
  %609 = vmatpush.bf16.msra.mxu0 %v468
  %610 = vmatpush.bf16.msra.mxu0 %v467
  %611 = vmatpush.bf16.msra.mxu0 %v466
  %612 = vmatpush.bf16.msra.mxu0 %v465
  %613 = vmatpush.bf16.msra.mxu0 %v464
  %614 = vmatpush.bf16.msra.mxu0 %v463
  %615 = vmatpush.bf16.msra.mxu0 %v462
  %616 = vmatpush.bf16.msra.mxu0 %v461
  %617 = vmatmul.bf16.gmra.mxu0 %v161
  %v618 = vpop.f32.mrf.mxu0
  %v619 = vadd.f32 %v606, %v618
  %v620 = vpop.f32.mrf.mxu0
  %621 = vdwg.mxu0
  %622 = vmatpush.bf16.msra.mxu0 %v476
  %623 = vmatpush.bf16.msra.mxu0 %v475
  %624 = vmatpush.bf16.msra.mxu0 %v474
  %625 = vmatpush.bf16.msra.mxu0 %v473
  %626 = vmatpush.bf16.msra.mxu0 %v472
  %627 = vmatpush.bf16.msra.mxu0 %v471
  %628 = vmatpush.bf16.msra.mxu0 %v470
  %629 = vmatpush.bf16.msra.mxu0 %v469
  %630 = vmatmul.bf16.gmra.mxu0 %v162
  %v631 = vpop.f32.mrf.mxu0
  %v632 = vadd.f32 %v619, %v631
  %v633 = vpop.f32.mrf.mxu0
  %634 = vdwg.mxu0
  %635 = vmatpush.bf16.msra.mxu0 %v484
  %636 = vmatpush.bf16.msra.mxu0 %v483
  %637 = vmatpush.bf16.msra.mxu0 %v482
  %638 = vmatpush.bf16.msra.mxu0 %v481
  %639 = vmatpush.bf16.msra.mxu0 %v480
  %640 = vmatpush.bf16.msra.mxu0 %v479
  %641 = vmatpush.bf16.msra.mxu0 %v478
  %642 = vmatpush.bf16.msra.mxu0 %v477
  %643 = vmatmul.bf16.gmra.mxu0 %v163
  %v644 = vpop.f32.mrf.mxu0
  %v645 = vadd.f32 %v632, %v644
  %v646 = vpop.f32.mrf.mxu0
  %647 = vdwg.mxu0
  %648 = vmatpush.bf16.msra.mxu0 %v492
  %649 = vmatpush.bf16.msra.mxu0 %v491
  %650 = vmatpush.bf16.msra.mxu0 %v490
  %651 = vmatpush.bf16.msra.mxu0 %v489
  %652 = vmatpush.bf16.msra.mxu0 %v488
  %653 = vmatpush.bf16.msra.mxu0 %v487
  %654 = vmatpush.bf16.msra.mxu0 %v486
  %655 = vmatpush.bf16.msra.mxu0 %v485
  %656 = vmatmul.bf16.gmra.mxu0 %v164
  %v657 = vpop.f32.mrf.mxu0
  %v658 = vadd.f32 %v645, %v657
  %v659 = vpop.f32.mrf.mxu0
  %660 = vdwg.mxu0
  %v661 = vmax.f32 %v658, 0.0
  %v662 = vld [vmem:[%s3] sm:$0xff]
  %v663 = vld [vmem:[%s3 + $0x8] sm:$0xff]
  %v664 = vld [vmem:[%s3 + $0x10] sm:$0xff]
  %v665 = vld [vmem:[%s3 + $0x18] sm:$0xff]
  %v666 = vld [vmem:[%s3 + $0xb9] sm:$0x1]
  %v667 = vperm.slane %v666, 0
  %vm668 = vcmask 261120
  %v670 = vsel %vm668, %v661, 0
  %672 = vmatpush.msra.mxu0 0.0
  %673 = vmatpush.msra.mxu0 0.0
  %674 = vmatpush.msra.mxu0 0.0
  %675 = vmatpush.msra.mxu0 0.0
  %676 = vmatpush.msra.mxu0 0.0
  %677 = vmatpush.msra.mxu0 0.0
  %678 = vmatpush.msra.mxu0 0.0
  %679 = vmatpush.msra.mxu0 0.0
  %680 = vmatpush.msra.mxu0 0.0
  %681 = vmatpush.msra.mxu0 0.0
  %682 = vmatpush.msra.mxu0 0.0
  %683 = vmatpush.msra.mxu0 0.0
  %684 = vmatpush.msra.mxu0 %v665
  %685 = vmatpush.msra.mxu0 %v664
  %686 = vmatpush.msra.mxu0 %v663
  %687 = vmatpush.msra.mxu0 %v662
  %688 = vmatmul.f32.gmra.mxu0 %v670
  %v689 = vpop.f32.mrf.mxu0
  %v690 = vadd.f32 %v667, %v689
  %691 = vdwg.mxu0
  %v692 = vmax.f32 %v690, 0.0
  %v693 = vld [vmem:[%s3 + $0x20] sm:$0xff]
  %v694 = vld [vmem:[%s3 + $0x28] sm:$0xff]
  %v695 = vld [vmem:[%s3 + $0x30] sm:$0xff]
  %v696 = vld [vmem:[%s3 + $0x38] sm:$0xff]
  %v697 = vld [vmem:[%s3 + $0xba] sm:$0x1]
  %v698 = vperm.slane %v697, 0
  %v700 = vsel %vm668, %v692, 0
  %702 = vmatpush.msra.mxu0 0.0
  %703 = vmatpush.msra.mxu0 0.0
  %704 = vmatpush.msra.mxu0 0.0
  %705 = vmatpush.msra.mxu0 0.0
  %706 = vmatpush.msra.mxu0 0.0
  %707 = vmatpush.msra.mxu0 0.0
  %708 = vmatpush.msra.mxu0 0.0
  %709 = vmatpush.msra.mxu0 0.0
  %710 = vmatpush.msra.mxu0 0.0
  %711 = vmatpush.msra.mxu0 0.0
  %712 = vmatpush.msra.mxu0 0.0
  %713 = vmatpush.msra.mxu0 0.0
  %714 = vmatpush.msra.mxu0 %v696
  %715 = vmatpush.msra.mxu0 %v695
  %716 = vmatpush.msra.mxu0 %v694
  %717 = vmatpush.msra.mxu0 %v693
  %718 = vmatmul.f32.gmra.mxu0 %v700
  %v719 = vpop.f32.mrf.mxu0
  %v720 = vadd.f32 %v698, %v719
  %721 = vdwg.mxu0
  %v722 = vmax.f32 %v720, 0.0
  %v723 = vld [vmem:[%s3 + $0x80] sm:$0xff]
  %v724 = vld [vmem:[%s3 + $0x88] sm:$0xff]
  %v725 = vld [vmem:[%s3 + $0x90] sm:$0xff]
  %v726 = vld [vmem:[%s3 + $0x98] sm:$0xff]
  %v727 = vld [vmem:[%s3 + $0xbb] sm:$0x1]
  %v728 = vperm.slane %v727, 0
  %v730 = vsel %vm668, %v722, 0
  %732 = vmatpush.msra.mxu0 0.0
  %733 = vmatpush.msra.mxu0 0.0
  %734 = vmatpush.msra.mxu0 0.0
  %735 = vmatpush.msra.mxu0 0.0
  %736 = vmatpush.msra.mxu0 0.0
  %737 = vmatpush.msra.mxu0 0.0
  %738 = vmatpush.msra.mxu0 0.0
  %739 = vmatpush.msra.mxu0 0.0
  %740 = vmatpush.msra.mxu0 0.0
  %741 = vmatpush.msra.mxu0 0.0
  %742 = vmatpush.msra.mxu0 0.0
  %743 = vmatpush.msra.mxu0 0.0
  %744 = vmatpush.msra.mxu0 %v726
  %745 = vmatpush.msra.mxu0 %v725
  %746 = vmatpush.msra.mxu0 %v724
  %747 = vmatpush.msra.mxu0 %v723
  %748 = vmatmul.f32.gmra.mxu0 %v730
  %v749 = vpop.f32.mrf.mxu0
  %v750 = vadd.f32 %v728, %v749
  %751 = vdwg.mxu0
  %v752 = vld [vmem:[%s1] sm:$0x3]
  %v753 = vmul.f32 %v750, 0.5
  %v754 = vmul.f32 %v753, 1.442695
  %v755 = vpow.pop %v754
  %757 = vrot.lane.b32.xlu0 %v755, 8
  %v758 = vpop.permute.xlu0 %757
  %v760 = vmul.f32 %v752, %v758
  %762 = vrot.lane.b32.xlu0 %v760, 118
  %v763 = vpop.permute.xlu0 %762
  %v765 = vadd.f32 %v750, %v763
  %v766 = vld [vmem:[%s3 + $0xa0] sm:$0x3]
  %v767 = vld [vmem:[%s3 + $0xa8] sm:$0xff]
  %v768 = vld [vmem:[%s3 + $0xb0] sm:$0x3]
  %vm769 = vcmask 80896
  %v771 = vsel %vm769, %v752, 0
  %vm773 = vcmask 1041408
  %v775 = vsel %vm773, %v768, 0
  %777 = vmatpush.msra.mxu0 0.0
  %778 = vmatpush.msra.mxu0 0.0
  %779 = vmatpush.msra.mxu0 0.0
  %780 = vmatpush.msra.mxu0 0.0
  %781 = vmatpush.msra.mxu0 0.0
  %782 = vmatpush.msra.mxu0 0.0
  %783 = vmatpush.msra.mxu0 0.0
  %784 = vmatpush.msra.mxu0 0.0
  %785 = vmatpush.msra.mxu0 0.0
  %786 = vmatpush.msra.mxu0 0.0
  %787 = vmatpush.msra.mxu0 0.0
  %788 = vmatpush.msra.mxu0 0.0
  %789 = vmatpush.msra.mxu0 0.0
  %790 = vmatpush.msra.mxu0 0.0
  %791 = vmatpush.msra.mxu0 %v775
  %792 = vmatpush.msra.mxu0 %v767
  %793 = vmatmul.f32.gmra.mxu0 %v771
  %v794 = vpop.f32.mrf.mxu0
  %v795 = vadd.f32 0.0, %v794
  %796 = vdwg.mxu0
  %vm797 = vcmask 15360
  %v799 = vsel %vm797, %v765, 0
  %v802 = vsel %vm773, %v766, 0
  %804 = vmatpush.msra.mxu0 0.0
  %805 = vmatpush.msra.mxu0 0.0
  %806 = vmatpush.msra.mxu0 0.0
  %807 = vmatpush.msra.mxu0 0.0
  %808 = vmatpush.msra.mxu0 0.0
  %809 = vmatpush.msra.mxu0 0.0
  %810 = vmatpush.msra.mxu0 0.0
  %811 = vmatpush.msra.mxu0 0.0
  %812 = vmatpush.msra.mxu0 0.0
  %813 = vmatpush.msra.mxu0 0.0
  %814 = vmatpush.msra.mxu0 0.0
  %815 = vmatpush.msra.mxu0 0.0
  %816 = vmatpush.msra.mxu0 0.0
  %817 = vmatpush.msra.mxu0 0.0
  %818 = vmatpush.msra.mxu0 0.0
  %819 = vmatpush.msra.mxu0 %v802
  %820 = vmatmul.f32.gmra.mxu0 %v799
  %v821 = vpop.f32.mrf.mxu0
  %v822 = vadd.f32 %v795, %v821
  %823 = vdwg.mxu0
  %v824 = vld [vmem:[%s3 + $0xbc] sm:$0x1]
  %v825 = vperm.slane %v824, 0
  %v826 = vadd.f32 %v822, %v825
  %v827 = vmax.f32 %v826, 0.0
  %v828 = vld [vmem:[%s3 + $0x40] sm:$0xff]
  %v829 = vld [vmem:[%s3 + $0x48] sm:$0xff]
  %v830 = vld [vmem:[%s3 + $0x50] sm:$0xff]
  %v831 = vld [vmem:[%s3 + $0x58] sm:$0xff]
  %v832 = vld [vmem:[%s3 + $0xbd] sm:$0x1]
  %v833 = vperm.slane %v832, 0
  %v835 = vsel %vm668, %v827, 0
  %837 = vmatpush.msra.mxu0 0.0
  %838 = vmatpush.msra.mxu0 0.0
  %839 = vmatpush.msra.mxu0 0.0
  %840 = vmatpush.msra.mxu0 0.0
  %841 = vmatpush.msra.mxu0 0.0
  %842 = vmatpush.msra.mxu0 0.0
  %843 = vmatpush.msra.mxu0 0.0
  %844 = vmatpush.msra.mxu0 0.0
  %845 = vmatpush.msra.mxu0 0.0
  %846 = vmatpush.msra.mxu0 0.0
  %847 = vmatpush.msra.mxu0 0.0
  %848 = vmatpush.msra.mxu0 0.0
  %849 = vmatpush.msra.mxu0 %v831
  %850 = vmatpush.msra.mxu0 %v830
  %851 = vmatpush.msra.mxu0 %v829
  %852 = vmatpush.msra.mxu0 %v828
  %853 = vmatmul.f32.gmra.mxu0 %v835
  %v854 = vpop.f32.mrf.mxu0
  %v855 = vadd.f32 %v833, %v854
  %856 = vdwg.mxu0
  %v857 = vmax.f32 %v855, 0.0
  %v858 = vld [vmem:[%s3 + $0x60] sm:$0xff]
  %v859 = vld [vmem:[%s3 + $0x68] sm:$0xff]
  %v860 = vld [vmem:[%s3 + $0x70] sm:$0xff]
  %v861 = vld [vmem:[%s3 + $0x78] sm:$0xff]
  %v862 = vld [vmem:[%s3 + $0xbe] sm:$0x1]
  %v863 = vperm.slane %v862, 0
  %v865 = vsel %vm668, %v857, 0
  %867 = vmatpush.msra.mxu0 0.0
  %868 = vmatpush.msra.mxu0 0.0
  %869 = vmatpush.msra.mxu0 0.0
  %870 = vmatpush.msra.mxu0 0.0
  %871 = vmatpush.msra.mxu0 0.0
  %872 = vmatpush.msra.mxu0 0.0
  %873 = vmatpush.msra.mxu0 0.0
  %874 = vmatpush.msra.mxu0 0.0
  %875 = vmatpush.msra.mxu0 0.0
  %876 = vmatpush.msra.mxu0 0.0
  %877 = vmatpush.msra.mxu0 0.0
  %878 = vmatpush.msra.mxu0 0.0
  %879 = vmatpush.msra.mxu0 %v861
  %880 = vmatpush.msra.mxu0 %v860
  %881 = vmatpush.msra.mxu0 %v859
  %882 = vmatpush.msra.mxu0 %v858
  %883 = vmatmul.f32.gmra.mxu0 %v865
  %v884 = vpop.f32.mrf.mxu0
  %v885 = vadd.f32 %v863, %v884
  %886 = vdwg.mxu0
  %v887 = vmax.f32 %v885, 0.0
  %v888 = vpack.c.bf16 %v887, %v887
  %v889 = vld [vmem:[%s4] sm:$0xff]
  %v890 = vld [vmem:[%s4 + $0x8] sm:$0xff]
  %v891 = vld [vmem:[%s4 + $0x10] sm:$0xff]
  %v892 = vld [vmem:[%s4 + $0x18] sm:$0xff]
  %v893 = vld [vmem:[%s4 + $0x20] sm:$0xff]
  %v894 = vld [vmem:[%s4 + $0x28] sm:$0xff]
  %v895 = vld [vmem:[%s4 + $0x30] sm:$0xff]
  %v896 = vld [vmem:[%s4 + $0x38] sm:$0xff]
  %v897 = vld [vmem:[%s4 + $0x40] sm:$0xff]
  %v898 = vld [vmem:[%s4 + $0x48] sm:$0xff]
  %v899 = vld [vmem:[%s4 + $0x50] sm:$0xff]
  %v900 = vld [vmem:[%s4 + $0x58] sm:$0xff]
  %v901 = vld [vmem:[%s4 + $0x60] sm:$0xff]
  %v902 = vld [vmem:[%s4 + $0x68] sm:$0xff]
  %v903 = vld [vmem:[%s4 + $0x70] sm:$0xff]
  %v904 = vld [vmem:[%s4 + $0x78] sm:$0xff]
  %v905 = vld [vmem:[%s5] sm:$0xff]
  %v907 = vperm.slane %v905, 0
  %v908 = vperm.slane %v905, 1
  %v909 = vperm.slane %v905, 2
  %v910 = vperm.slane %v905, 3
  %v911 = vperm.slane %v905, 4
  %v912 = vperm.slane %v905, 5
  %v913 = vperm.slane %v905, 6
  %v914 = vperm.slane %v905, 7
  %v939 = vunpack.c.l.b16 %v889
  %v940 = vunpack.c.h.b16 %v889
  %v941 = vunpack.c.l.b16 %v890
  %v942 = vunpack.c.h.b16 %v890
  %v943 = vunpack.c.l.b16 %v891
  %v944 = vunpack.c.h.b16 %v891
  %v945 = vunpack.c.l.b16 %v892
  %v946 = vunpack.c.h.b16 %v892
  %v947 = vunpack.c.l.b16 %v893
  %v948 = vunpack.c.h.b16 %v893
  %v949 = vunpack.c.l.b16 %v894
  %v950 = vunpack.c.h.b16 %v894
  %v951 = vunpack.c.l.b16 %v895
  %v952 = vunpack.c.h.b16 %v895
  %v953 = vunpack.c.l.b16 %v896
  %v954 = vunpack.c.h.b16 %v896
  %v955 = vunpack.c.l.b16 %v897
  %v956 = vunpack.c.h.b16 %v897
  %v957 = vunpack.c.l.b16 %v898
  %v958 = vunpack.c.h.b16 %v898
  %v959 = vunpack.c.l.b16 %v899
  %v960 = vunpack.c.h.b16 %v899
  %v961 = vunpack.c.l.b16 %v900
  %v962 = vunpack.c.h.b16 %v900
  %v963 = vunpack.c.l.b16 %v901
  %v964 = vunpack.c.h.b16 %v901
  %v965 = vunpack.c.l.b16 %v902
  %v966 = vunpack.c.h.b16 %v902
  %v967 = vunpack.c.l.b16 %v903
  %v968 = vunpack.c.h.b16 %v903
  %v969 = vunpack.c.l.b16 %v904
  %v970 = vunpack.c.h.b16 %v904
  %v971 = vpack.c.b16 %v947, %v939
  %v972 = vpack.c.b16 %v948, %v940
  %v973 = vpack.c.b16 %v949, %v941
  %v974 = vpack.c.b16 %v950, %v942
  %v975 = vpack.c.b16 %v951, %v943
  %v976 = vpack.c.b16 %v952, %v944
  %v977 = vpack.c.b16 %v953, %v945
  %v978 = vpack.c.b16 %v954, %v946
  %v979 = vpack.c.b16 %v963, %v955
  %v980 = vpack.c.b16 %v964, %v956
  %v981 = vpack.c.b16 %v965, %v957
  %v982 = vpack.c.b16 %v966, %v958
  %v983 = vpack.c.b16 %v967, %v959
  %v984 = vpack.c.b16 %v968, %v960
  %v985 = vpack.c.b16 %v969, %v961
  %v986 = vpack.c.b16 %v970, %v962
  %v1004 = vsel %vm668, %v888, 0
  %1006 = vmatpush.bf16.msra.mxu0 0
  %1007 = vmatpush.bf16.msra.mxu0 0
  %1008 = vmatpush.bf16.msra.mxu0 0
  %1009 = vmatpush.bf16.msra.mxu0 0
  %1010 = vmatpush.bf16.msra.mxu0 0
  %1011 = vmatpush.bf16.msra.mxu0 0
  %1012 = vmatpush.bf16.msra.mxu0 %v979
  %1013 = vmatpush.bf16.msra.mxu0 %v971
  %1014 = vmatmul.bf16.gmra.mxu0 %v1004
  %v1015 = vpop.f32.mrf.mxu0
  %v1016 = vadd.f32 %v907, %v1015
  %v1017 = vpop.f32.mrf.mxu0
  %1018 = vdwg.mxu0
  %1019 = vmatpush.bf16.msra.mxu0 0
  %1020 = vmatpush.bf16.msra.mxu0 0
  %1021 = vmatpush.bf16.msra.mxu0 0
  %1022 = vmatpush.bf16.msra.mxu0 0
  %1023 = vmatpush.bf16.msra.mxu0 0
  %1024 = vmatpush.bf16.msra.mxu0 0
  %1025 = vmatpush.bf16.msra.mxu0 %v980
  %1026 = vmatpush.bf16.msra.mxu0 %v972
  %1027 = vmatmul.bf16.gmra.mxu0 %v1004
  %v1028 = vpop.f32.mrf.mxu0
  %v1029 = vadd.f32 %v908, %v1028
  %v1030 = vpop.f32.mrf.mxu0
  %1031 = vdwg.mxu0
  %1032 = vmatpush.bf16.msra.mxu0 0
  %1033 = vmatpush.bf16.msra.mxu0 0
  %1034 = vmatpush.bf16.msra.mxu0 0
  %1035 = vmatpush.bf16.msra.mxu0 0
  %1036 = vmatpush.bf16.msra.mxu0 0
  %1037 = vmatpush.bf16.msra.mxu0 0
  %1038 = vmatpush.bf16.msra.mxu0 %v981
  %1039 = vmatpush.bf16.msra.mxu0 %v973
  %1040 = vmatmul.bf16.gmra.mxu0 %v1004
  %v1041 = vpop.f32.mrf.mxu0
  %v1042 = vadd.f32 %v909, %v1041
  %v1043 = vpop.f32.mrf.mxu0
  %1044 = vdwg.mxu0
  %1045 = vmatpush.bf16.msra.mxu0 0
  %1046 = vmatpush.bf16.msra.mxu0 0
  %1047 = vmatpush.bf16.msra.mxu0 0
  %1048 = vmatpush.bf16.msra.mxu0 0
  %1049 = vmatpush.bf16.msra.mxu0 0
  %1050 = vmatpush.bf16.msra.mxu0 0
  %1051 = vmatpush.bf16.msra.mxu0 %v982
  %1052 = vmatpush.bf16.msra.mxu0 %v974
  %1053 = vmatmul.bf16.gmra.mxu0 %v1004
  %v1054 = vpop.f32.mrf.mxu0
  %v1055 = vadd.f32 %v910, %v1054
  %v1056 = vpop.f32.mrf.mxu0
  %1057 = vdwg.mxu0
  %1058 = vmatpush.bf16.msra.mxu0 0
  %1059 = vmatpush.bf16.msra.mxu0 0
  %1060 = vmatpush.bf16.msra.mxu0 0
  %1061 = vmatpush.bf16.msra.mxu0 0
  %1062 = vmatpush.bf16.msra.mxu0 0
  %1063 = vmatpush.bf16.msra.mxu0 0
  %1064 = vmatpush.bf16.msra.mxu0 %v983
  %1065 = vmatpush.bf16.msra.mxu0 %v975
  %1066 = vmatmul.bf16.gmra.mxu0 %v1004
  %v1067 = vpop.f32.mrf.mxu0
  %v1068 = vadd.f32 %v911, %v1067
  %v1069 = vpop.f32.mrf.mxu0
  %1070 = vdwg.mxu0
  %1071 = vmatpush.bf16.msra.mxu0 0
  %1072 = vmatpush.bf16.msra.mxu0 0
  %1073 = vmatpush.bf16.msra.mxu0 0
  %1074 = vmatpush.bf16.msra.mxu0 0
  %1075 = vmatpush.bf16.msra.mxu0 0
  %1076 = vmatpush.bf16.msra.mxu0 0
  %1077 = vmatpush.bf16.msra.mxu0 %v984
  %1078 = vmatpush.bf16.msra.mxu0 %v976
  %1079 = vmatmul.bf16.gmra.mxu0 %v1004
  %v1080 = vpop.f32.mrf.mxu0
  %v1081 = vadd.f32 %v912, %v1080
  %v1082 = vpop.f32.mrf.mxu0
  %1083 = vdwg.mxu0
  %1084 = vmatpush.bf16.msra.mxu0 0
  %1085 = vmatpush.bf16.msra.mxu0 0
  %1086 = vmatpush.bf16.msra.mxu0 0
  %1087 = vmatpush.bf16.msra.mxu0 0
  %1088 = vmatpush.bf16.msra.mxu0 0
  %1089 = vmatpush.bf16.msra.mxu0 0
  %1090 = vmatpush.bf16.msra.mxu0 %v985
  %1091 = vmatpush.bf16.msra.mxu0 %v977
  %1092 = vmatmul.bf16.gmra.mxu0 %v1004
  %v1093 = vpop.f32.mrf.mxu0
  %v1094 = vadd.f32 %v913, %v1093
  %v1095 = vpop.f32.mrf.mxu0
  %1096 = vdwg.mxu0
  %1097 = vmatpush.bf16.msra.mxu0 0
  %1098 = vmatpush.bf16.msra.mxu0 0
  %1099 = vmatpush.bf16.msra.mxu0 0
  %1100 = vmatpush.bf16.msra.mxu0 0
  %1101 = vmatpush.bf16.msra.mxu0 0
  %1102 = vmatpush.bf16.msra.mxu0 0
  %1103 = vmatpush.bf16.msra.mxu0 %v986
  %1104 = vmatpush.bf16.msra.mxu0 %v978
  %1105 = vmatmul.bf16.gmra.mxu0 %v1004
  %v1106 = vpop.f32.mrf.mxu0
  %v1107 = vadd.f32 %v914, %v1106
  %v1108 = vpop.f32.mrf.mxu0
  %1109 = vdwg.mxu0
  %v1118 = vrot.slane %v1029, 6
  %v1119 = vrot.slane %v1042, 4
  %v1120 = vrot.slane %v1055, 2
  %v1121 = vrot.slane %v1081, 6
  %v1122 = vrot.slane %v1094, 4
  %v1123 = vrot.slane %v1107, 2
  %v1124 = vsel %vm773, %v1016, %v1118
  %vm1125 = vcmask 1045508
  %v1126 = vsel %vm1125, %v1119, %v1120
  %vm1127 = vcmask 1043456
  %v1128 = vsel %vm1127, %v1124, %v1126
  %v1129 = vsel %vm773, %v1068, %v1121
  %v1130 = vsel %vm1125, %v1122, %v1123
  %v1131 = vsel %vm1127, %v1129, %v1130
  %1134 = vst [vmem:[%s6] sm:$0xff] %v1128
  %1135 = vst [vmem:[%s6 + $0x8] sm:$0xff] %v1131
  // Predicated region
  $region26: #{cvae_forward.1} parent=0 // pred_check
    _
  $region27: #{cvae_forward.1} parent=0 // pred_check_branch
    %1137 = sbr.rel (0) target = $region29
  $region28: #{cvae_forward.1} parent=0 // pred_region
    _
  $region29: #{cvae_forward.1} parent=0 // pred_fallthru
    _
  // Predicated region
  $region30: #{cvae_forward.1} parent=0 // pred_check
    _
  $region31: #{cvae_forward.1} parent=0 // pred_check_branch
    %1139 = sbr.rel (0) target = $region33
  $region32: #{cvae_forward.1} parent=0 // pred_region
    _
  $region33: #{cvae_forward.1} parent=0 // pred_fallthru
    _

</llo_original>
